<compile_context>
chip_gen: v7x
topology: tpu7x:2x2x1
jax: 0.10.0
libtpu: 0.0.40
codegen_flags: <defaults>
</compile_context>

<pallas_src>
import functools

import jax
import jax.numpy as jnp
from jax.experimental import pallas as pl
from jax.experimental.pallas import tpu as pltpu


def _cls_attn_kernel(x_ref, cls_ref, wq_ref, bq_ref, wkv_ref, bkv_ref,
                     wp_ref, bp_ref, seg_ref, segT_ref, o_ref, *, inv_scale):
    """One block of Bt batch rows per grid step.

    x_ref   : (Bt, N, C)  bf16 tokens
    cls_ref : (Bt, C)     bf16 CLS tokens
    wq_ref  : (C, C)   bf16   bq_ref  : (1, C)  f32
    wkv_ref : (C, 2C)  bf16   bkv_ref : (1, 2C) f32   (k and v fused)
    wp_ref  : (C, C)   bf16   bp_ref  : (1, C)  f32
    seg_ref : (C, H)   f32  block-diagonal channel->head reduction map
    segT_ref: (H, C)   f32  head->channel replication map
    o_ref   : (Bt, C)
    """
    Bt, N, C = x_ref.shape
    H = seg_ref.shape[1]

    # Fused k/v projection: one wide MXU pass, f32 accumulation.
    xf = x_ref[...].reshape(Bt * N, C)                                   # bf16
    kv = jnp.dot(xf, wkv_ref[...],
                 preferred_element_type=jnp.float32) + bkv_ref[...]     # (Bt*N, 2C)
    k = kv[:, :C].reshape(Bt, N, C)                                      # f32
    v = kv[:, C:].reshape(Bt, N, C)                                      # f32

    # q from the CLS token only; fold the module's divide-by-scale quirk
    # (multiply logits by sqrt(head_dim)) into q as a constant scale.
    q = jnp.dot(cls_ref[...], wq_ref[...],
                preferred_element_type=jnp.float32) + bq_ref[...]        # (Bt, C)
    q = q * inv_scale

    # Per-head logits: scores[b, n, h] = sum_{c in head h} q[b, c] * k[b, n, c]
    prod = (q[:, None, :] * k).reshape(Bt * N, C)                        # f32
    scores = jnp.dot(prod, seg_ref[...],
                     preferred_element_type=jnp.float32).reshape(Bt, N, H)

    # Numerically stable softmax over the token axis; normalization deferred.
    m = jnp.max(scores, axis=1, keepdims=True)                           # (Bt, 1, H)
    e = jnp.exp(scores - m)                                              # (Bt, N, H)

    # Replicate per-head weights back to channels once (block-diag expansion);
    # reused for both numerator and denominator.
    e_full = jnp.dot(e.reshape(Bt * N, H), segT_ref[...],
                     preferred_element_type=jnp.float32).reshape(Bt, N, C)
    num = jnp.sum(e_full * v, axis=1)                                    # (Bt, C)
    den = jnp.sum(e_full, axis=1)                                        # (Bt, C)
    attn_out = num * pl.reciprocal(den, approx=True)                     # (Bt, C)

    # Final projection (nn.Linear): bf16 operands, f32 accumulation.
    y = jnp.dot(attn_out.astype(wp_ref.dtype), wp_ref[...],
                preferred_element_type=jnp.float32) + bp_ref[...]
    o_ref[...] = y.astype(o_ref.dtype)


def conv_proj_cls_attention(x, params, *, num_heads):
    """x: (B, N, C) -> (B, 1, C)."""
    B, N, C = x.shape
    head_dim = C // num_heads
    scale = head_dim ** (-0.5)
    inv_scale = float(1.0 / scale)        # the module DIVIDES by scale

    cdt = jnp.bfloat16                    # MXU compute dtype

    # Conv1d weight (C_out, C_in, 1) -> (C_in, C_out) so y = x @ W^T; bf16.
    wqT = params["wq_w"][:, :, 0].T.astype(cdt)                          # (C, C)
    wkT = params["wk_w"][:, :, 0].T
    wvT = params["wv_w"][:, :, 0].T
    wkvT = jnp.concatenate([wkT, wvT], axis=1).astype(cdt)               # (C, 2C)
    wpT = params["proj_w"].T.astype(cdt)                                 # (C, C)
    bq = params["wq_b"].reshape(1, C).astype(jnp.float32)
    bkv = jnp.concatenate([params["wk_b"], params["wv_b"]]
                          ).reshape(1, 2 * C).astype(jnp.float32)
    bp = params["proj_b"].reshape(1, C).astype(jnp.float32)

    # Block-diagonal channel<->head maps, built once on host.
    c_idx = jnp.arange(C)
    h_idx = jnp.arange(num_heads)
    seg = (c_idx[:, None] // head_dim == h_idx[None, :]).astype(jnp.float32)  # (C, H)
    segT = seg.T                                                              # (H, C)

    x_bf = x.astype(cdt)                  # (B, N, C)
    x_cls = x[:, 0, :].astype(cdt)        # (B, C)

    # Batch block size: all of B when small; otherwise a multiple of 8 sized so
    # the double-buffered x block stays well within v7x's 64 MiB VMEM.
    if B <= 8:
        Bt = B
    else:
        bytes_per_batch = N * C * jnp.dtype(cdt).itemsize
        cap = max(8, min(64, (8 * 1024 * 1024) // max(1, bytes_per_batch)))
        Bt = max(8, (min(B, cap) // 8) * 8)

    kernel = functools.partial(_cls_attn_kernel, inv_scale=inv_scale)

    const2d = lambda b: (0, 0)

    out = pl.pallas_call(
        kernel,
        out_shape=jax.ShapeDtypeStruct((B, C), x.dtype),
        grid_spec=pltpu.PrefetchScalarGridSpec(
            num_scalar_prefetch=0,
            grid=(pl.cdiv(B, Bt),),
            in_specs=[
                pl.BlockSpec((Bt, N, C), lambda b: (b, 0, 0)),   # x (per batch block)
                pl.BlockSpec((Bt, C), lambda b: (b, 0)),         # CLS rows
                pl.BlockSpec((C, C), const2d),                   # wqT
                pl.BlockSpec((1, C), const2d),                   # bq
                pl.BlockSpec((C, 2 * C), const2d),               # wkvT (fused)
                pl.BlockSpec((1, 2 * C), const2d),               # bkv
                pl.BlockSpec((C, C), const2d),                   # wpT
                pl.BlockSpec((1, C), const2d),                   # bp
                pl.BlockSpec((C, num_heads), const2d),           # seg
                pl.BlockSpec((num_heads, C), const2d),           # seg^T
            ],
            out_specs=pl.BlockSpec((Bt, C), lambda b: (b, 0)),
        ),
        compiler_params=pltpu.CompilerParams(
            dimension_semantics=("parallel",),        # batch axis across TCs (v7x)
            vmem_limit_bytes=48 * 1024 * 1024,        # above scoped default, < 64 MiB phys
        ),
    )(x_bf, x_cls, wqT, bq, wkvT, bkv, wpT, bp, seg, segT)
    return out.reshape(B, 1, C)


def reference(x, params, *, num_heads):
    """Pure-JAX f32 reference mirroring the PyTorch forward exactly."""
    B, N, C = x.shape
    hd = C // num_heads
    scale = hd ** (-0.5)

    def lin(inp, w_conv, b):  # Conv1d kernel_size=1 == per-token linear
        return jnp.einsum("bnc,oc->bno", inp, w_conv[:, :, 0]) + b

    q = lin(x[:, 0:1, :], params["wq_w"], params["wq_b"])
    k = lin(x, params["wk_w"], params["wk_b"])
    v = lin(x, params["wv_w"], params["wv_b"])
    q = q.reshape(B, 1, num_heads, hd).transpose(0, 2, 1, 3)
    k = k.reshape(B, N, num_heads, hd).transpose(0, 2, 1, 3)
    v = v.reshape(B, N, num_heads, hd).transpose(0, 2, 1, 3)
    attn = jnp.einsum("bhqd,bhkd->bhqk", q, k) / scale
    attn = jax.nn.softmax(attn, axis=-1)
    out = jnp.einsum("bhqk,bhkd->bhqd", attn, v)
    out = out.transpose(0, 2, 1, 3).reshape(B, 1, C)
    out = out @ params["proj_w"].T + params["proj_b"]
    return out


if __name__ == "__main__":
    B, N, C = 2, 8, 32
    num_heads = 8

    key = jax.random.PRNGKey(0)
    ks = jax.random.split(key, 9)
    params = {
        "wq_w": jax.random.normal(ks[0], (C, C, 1), jnp.float32) * 0.1,
        "wq_b": jax.random.normal(ks[1], (C,), jnp.float32) * 0.1,
        "wk_w": jax.random.normal(ks[2], (C, C, 1), jnp.float32) * 0.1,
        "wk_b": jax.random.normal(ks[3], (C,), jnp.float32) * 0.1,
        "wv_w": jax.random.normal(ks[4], (C, C, 1), jnp.float32) * 0.1,
        "wv_b": jax.random.normal(ks[5], (C,), jnp.float32) * 0.1,
        "proj_w": jax.random.normal(ks[6], (C, C), jnp.float32) * 0.1,
        "proj_b": jax.random.normal(ks[7], (C,), jnp.float32) * 0.1,
    }
    x = jax.random.normal(ks[8], (B, N, C), jnp.float32)

    out = conv_proj_cls_attention(x, params, num_heads=num_heads)
    out = jax.block_until_ready(out)

    ref = reference(x, params, num_heads=num_heads)
    assert out.shape == (B, 1, C), out.shape
    # bf16 MXU operands (f32 accumulation) -> relaxed tolerance vs f32 reference.
    assert jnp.allclose(out, ref, atol=5e-2, rtol=5e-2), (
        float(jnp.max(jnp.abs(out - ref))))

    print("KERNEL_OK")
</pallas_src>

<mosaic_0001>
module attributes {stable_mosaic.version = 11 : i64} {
  func.func @_cls_attn_kernel(%arg0: i32, %arg1: memref<2x8x32xbf16, #tpu.memory_space<vmem>>, %arg2: memref<2x32xbf16, #tpu.memory_space<vmem>>, %arg3: memref<32x32xbf16, #tpu.memory_space<vmem>>, %arg4: memref<1x32xf32, #tpu.memory_space<vmem>>, %arg5: memref<32x64xbf16, #tpu.memory_space<vmem>>, %arg6: memref<1x64xf32, #tpu.memory_space<vmem>>, %arg7: memref<32x32xbf16, #tpu.memory_space<vmem>>, %arg8: memref<1x32xf32, #tpu.memory_space<vmem>>, %arg9: memref<32x8xf32, #tpu.memory_space<vmem>>, %arg10: memref<8x32xf32, #tpu.memory_space<vmem>>, %arg11: memref<2x32xf32, #tpu.memory_space<vmem>>) attributes {dimension_semantics = [#tpu.dimension_semantics<parallel>], iteration_bounds = array<i64: 1>, scalar_prefetch = 0 : i64, scratch_operands = 0 : i64, tpu.core_type = #tpu.core_type<tc>, window_params = [{transform_indices = @transform_0, window_bounds = array<i64: 2, 8, 32>}, {transform_indices = @transform_1, window_bounds = array<i64: 2, 32>}, {pipeline_mode = #tpu.pipeline_mode<synchronous>, transform_indices = @transform_2, window_bounds = array<i64: 32, 32>}, {pipeline_mode = #tpu.pipeline_mode<synchronous>, transform_indices = @transform_3, window_bounds = array<i64: 1, 32>}, {pipeline_mode = #tpu.pipeline_mode<synchronous>, transform_indices = @transform_4, window_bounds = array<i64: 32, 64>}, {pipeline_mode = #tpu.pipeline_mode<synchronous>, transform_indices = @transform_5, window_bounds = array<i64: 1, 64>}, {pipeline_mode = #tpu.pipeline_mode<synchronous>, transform_indices = @transform_6, window_bounds = array<i64: 32, 32>}, {pipeline_mode = #tpu.pipeline_mode<synchronous>, transform_indices = @transform_7, window_bounds = array<i64: 1, 32>}, {pipeline_mode = #tpu.pipeline_mode<synchronous>, transform_indices = @transform_8, window_bounds = array<i64: 32, 8>}, {pipeline_mode = #tpu.pipeline_mode<synchronous>, transform_indices = @transform_9, window_bounds = array<i64: 8, 32>}, {transform_indices = @transform_10, window_bounds = array<i64: 2, 32>}]} {
    %c0 = arith.constant 0 : index
    %c0_0 = arith.constant 0 : index
    %c0_1 = arith.constant 0 : index
    %0 = vector.load %arg1[%c0, %c0_0, %c0_1] : memref<2x8x32xbf16, #tpu.memory_space<vmem>>, vector<2x8x32xbf16>
    %1 = vector.shape_cast %0 : vector<2x8x32xbf16> to vector<16x32xbf16>
    %c0_2 = arith.constant 0 : index
    %c0_3 = arith.constant 0 : index
    %2 = vector.load %arg5[%c0_2, %c0_3] : memref<32x64xbf16, #tpu.memory_space<vmem>>, vector<32x64xbf16>
    %cst = arith.constant dense<0.000000e+00> : vector<16x64xf32>
    %3 = tpu.matmul %1, %2, %cst {dimension_numbers = #tpu.dot_dimension_numbers<[1], [0], [0], [1], [0, 0, 1, 1], [], []>} : vector<16x32xbf16>, vector<32x64xbf16>, vector<16x64xf32> -> vector<16x64xf32>
    %c0_4 = arith.constant 0 : index
    %c0_5 = arith.constant 0 : index
    %4 = vector.load %arg6[%c0_4, %c0_5] : memref<1x64xf32, #tpu.memory_space<vmem>>, vector<1x64xf32>
    %5 = vector.broadcast %4 : vector<1x64xf32> to vector<16x64xf32>
    %6 = arith.addf %3, %5 : vector<16x64xf32>
    %7 = vector.extract_strided_slice %6 {offsets = [0, 0], sizes = [16, 32], strides = [1, 1]} : vector<16x64xf32> to vector<16x32xf32>
    %8 = vector.shape_cast %7 : vector<16x32xf32> to vector<2x8x32xf32>
    %9 = vector.extract_strided_slice %6 {offsets = [0, 32], sizes = [16, 32], strides = [1, 1]} : vector<16x64xf32> to vector<16x32xf32>
    %10 = vector.shape_cast %9 : vector<16x32xf32> to vector<2x8x32xf32>
    %c0_6 = arith.constant 0 : index
    %c0_7 = arith.constant 0 : index
    %11 = vector.load %arg2[%c0_6, %c0_7] : memref<2x32xbf16, #tpu.memory_space<vmem>>, vector<2x32xbf16>
    %c0_8 = arith.constant 0 : index
    %c0_9 = arith.constant 0 : index
    %12 = vector.load %arg3[%c0_8, %c0_9] : memref<32x32xbf16, #tpu.memory_space<vmem>>, vector<32x32xbf16>
    %cst_10 = arith.constant dense<0.000000e+00> : vector<2x32xf32>
    %13 = tpu.matmul %11, %12, %cst_10 {dimension_numbers = #tpu.dot_dimension_numbers<[1], [0], [0], [1], [0, 0, 1, 1], [], []>} : vector<2x32xbf16>, vector<32x32xbf16>, vector<2x32xf32> -> vector<2x32xf32>
    %c0_11 = arith.constant 0 : index
    %c0_12 = arith.constant 0 : index
    %14 = vector.load %arg4[%c0_11, %c0_12] : memref<1x32xf32, #tpu.memory_space<vmem>>, vector<1x32xf32>
    %15 = vector.broadcast %14 : vector<1x32xf32> to vector<2x32xf32>
    %16 = arith.addf %13, %15 : vector<2x32xf32>
    %cst_13 = arith.constant 2.000000e+00 : f32
    %17 = vector.broadcast %cst_13 : f32 to vector<2x32xf32>
    %18 = arith.mulf %16, %17 : vector<2x32xf32>
    %19 = vector.shape_cast %18 : vector<2x32xf32> to vector<2x1x32xf32>
    %20 = vector.broadcast %19 : vector<2x1x32xf32> to vector<2x8x32xf32>
    %21 = arith.mulf %20, %8 : vector<2x8x32xf32>
    %22 = vector.shape_cast %21 : vector<2x8x32xf32> to vector<16x32xf32>
    %c0_14 = arith.constant 0 : index
    %c0_15 = arith.constant 0 : index
    %23 = vector.load %arg9[%c0_14, %c0_15] : memref<32x8xf32, #tpu.memory_space<vmem>>, vector<32x8xf32>
    %cst_16 = arith.constant dense<0.000000e+00> : vector<16x8xf32>
    %24 = tpu.matmul %22, %23, %cst_16 {dimension_numbers = #tpu.dot_dimension_numbers<[1], [0], [0], [1], [0, 0, 1, 1], [], []>} : vector<16x32xf32>, vector<32x8xf32>, vector<16x8xf32> -> vector<16x8xf32>
    %25 = vector.shape_cast %24 : vector<16x8xf32> to vector<2x8x8xf32>
    %cst_17 = arith.constant dense<0xFF800000> : vector<2x8xf32>
    %26 = vector.multi_reduction <maximumf>, %25, %cst_17 [1] : vector<2x8x8xf32> to vector<2x8xf32>
    %27 = vector.shape_cast %26 : vector<2x8xf32> to vector<2x1x8xf32>
    %28 = vector.broadcast %27 : vector<2x1x8xf32> to vector<2x8x8xf32>
    %29 = arith.subf %25, %28 : vector<2x8x8xf32>
    %30 = math.exp %29 : vector<2x8x8xf32>
    %31 = vector.shape_cast %30 : vector<2x8x8xf32> to vector<16x8xf32>
    %c0_18 = arith.constant 0 : index
    %c0_19 = arith.constant 0 : index
    %32 = vector.load %arg10[%c0_18, %c0_19] : memref<8x32xf32, #tpu.memory_space<vmem>>, vector<8x32xf32>
    %cst_20 = arith.constant dense<0.000000e+00> : vector<16x32xf32>
    %33 = tpu.matmul %31, %32, %cst_20 {dimension_numbers = #tpu.dot_dimension_numbers<[1], [0], [0], [1], [0, 0, 1, 1], [], []>} : vector<16x8xf32>, vector<8x32xf32>, vector<16x32xf32> -> vector<16x32xf32>
    %34 = vector.shape_cast %33 : vector<16x32xf32> to vector<2x8x32xf32>
    %35 = arith.mulf %34, %10 : vector<2x8x32xf32>
    %cst_21 = arith.constant dense<0.000000e+00> : vector<2x32xf32>
    %36 = vector.multi_reduction <add>, %35, %cst_21 [1] : vector<2x8x32xf32> to vector<2x32xf32>
    %cst_22 = arith.constant dense<0.000000e+00> : vector<2x32xf32>
    %37 = vector.multi_reduction <add>, %34, %cst_22 [1] : vector<2x8x32xf32> to vector<2x32xf32>
    %38 = tpu.reciprocal %37 {approx = true} : vector<2x32xf32> -> vector<2x32xf32>
    %39 = arith.mulf %36, %38 : vector<2x32xf32>
    %40 = arith.truncf %39 : vector<2x32xf32> to vector<2x32xbf16>
    %c0_23 = arith.constant 0 : index
    %c0_24 = arith.constant 0 : index
    %41 = vector.load %arg7[%c0_23, %c0_24] : memref<32x32xbf16, #tpu.memory_space<vmem>>, vector<32x32xbf16>
    %cst_25 = arith.constant dense<0.000000e+00> : vector<2x32xf32>
    %42 = tpu.matmul %40, %41, %cst_25 {dimension_numbers = #tpu.dot_dimension_numbers<[1], [0], [0], [1], [0, 0, 1, 1], [], []>} : vector<2x32xbf16>, vector<32x32xbf16>, vector<2x32xf32> -> vector<2x32xf32>
    %c0_26 = arith.constant 0 : index
    %c0_27 = arith.constant 0 : index
    %43 = vector.load %arg8[%c0_26, %c0_27] : memref<1x32xf32, #tpu.memory_space<vmem>>, vector<1x32xf32>
    %44 = vector.broadcast %43 : vector<1x32xf32> to vector<2x32xf32>
    %45 = arith.addf %42, %44 : vector<2x32xf32>
    %c0_28 = arith.constant 0 : index
    %c0_29 = arith.constant 0 : index
    %46 = vector.load %arg11[%c0_28, %c0_29] : memref<2x32xf32, #tpu.memory_space<vmem>>, vector<2x32xf32>
    tpu.vector_store %arg11[%c0_28, %c0_29], %45 {strides = array<i32>} : memref<2x32xf32, #tpu.memory_space<vmem>>, vector<2x32xf32>,
    return
  }
  func.func @transform_0(%arg0: i32) -> (i32, i32, i32) {
    %c0_i32 = arith.constant 0 : i32
    %c0_i32_0 = arith.constant 0 : i32
    %c0_i32_1 = arith.constant 0 : i32
    return %arg0, %c0_i32, %c0_i32_0 : i32, i32, i32
  }
  func.func @transform_1(%arg0: i32) -> (i32, i32) {
    %c0_i32 = arith.constant 0 : i32
    %c0_i32_0 = arith.constant 0 : i32
    return %arg0, %c0_i32 : i32, i32
  }
  func.func @transform_2(%arg0: i32) -> (i32, i32) {
    %c0_i32 = arith.constant 0 : i32
    %c0_i32_0 = arith.constant 0 : i32
    %c0_i32_1 = arith.constant 0 : i32
    return %c0_i32, %c0_i32_0 : i32, i32
  }
  func.func @transform_3(%arg0: i32) -> (i32, i32) {
    %c0_i32 = arith.constant 0 : i32
    %c0_i32_0 = arith.constant 0 : i32
    %c0_i32_1 = arith.constant 0 : i32
    return %c0_i32, %c0_i32_0 : i32, i32
  }
  func.func @transform_4(%arg0: i32) -> (i32, i32) {
    %c0_i32 = arith.constant 0 : i32
    %c0_i32_0 = arith.constant 0 : i32
    %c0_i32_1 = arith.constant 0 : i32
    return %c0_i32, %c0_i32_0 : i32, i32
  }
  func.func @transform_5(%arg0: i32) -> (i32, i32) {
    %c0_i32 = arith.constant 0 : i32
    %c0_i32_0 = arith.constant 0 : i32
    %c0_i32_1 = arith.constant 0 : i32
    return %c0_i32, %c0_i32_0 : i32, i32
  }
  func.func @transform_6(%arg0: i32) -> (i32, i32) {
    %c0_i32 = arith.constant 0 : i32
    %c0_i32_0 = arith.constant 0 : i32
    %c0_i32_1 = arith.constant 0 : i32
    return %c0_i32, %c0_i32_0 : i32, i32
  }
  func.func @transform_7(%arg0: i32) -> (i32, i32) {
    %c0_i32 = arith.constant 0 : i32
    %c0_i32_0 = arith.constant 0 : i32
    %c0_i32_1 = arith.constant 0 : i32
    return %c0_i32, %c0_i32_0 : i32, i32
  }
  func.func @transform_8(%arg0: i32) -> (i32, i32) {
    %c0_i32 = arith.constant 0 : i32
    %c0_i32_0 = arith.constant 0 : i32
    %c0_i32_1 = arith.constant 0 : i32
    return %c0_i32, %c0_i32_0 : i32, i32
  }
  func.func @transform_9(%arg0: i32) -> (i32, i32) {
    %c0_i32 = arith.constant 0 : i32
    %c0_i32_0 = arith.constant 0 : i32
    %c0_i32_1 = arith.constant 0 : i32
    return %c0_i32, %c0_i32_0 : i32, i32
  }
  func.func @transform_10(%arg0: i32) -> (i32, i32) {
    %c0_i32 = arith.constant 0 : i32
    %c0_i32_0 = arith.constant 0 : i32
    return %arg0, %c0_i32 : i32, i32
  }
}

</mosaic_0001>

<llo_original>
// kernel: tpu_custom_call.1
$region0: #{tpu_custom_call.1}
  #allocation0 [shape = 'u32[]', space=smem, size = 0x4, offset = 0x4, fixed_abs, tag = 'smem constant byte address 0x4 - core index']
  #allocation1 [shape = 'u32[144,128]{1,0:T(1,128)}', space=vmem, size = 0x12000, scoped, tag = 'internal scratch']
  %s0 = inlined_call_operand.hbm [shape: bf16[2,8,32], index: 0, kind: input, shape index: {}]
  %s1 = inlined_call_operand.vmem [shape: bf16[2,32], index: 1, kind: input, shape index: {}]
  %s2 = inlined_call_operand.vmem [shape: bf16[32,32], index: 2, kind: input, shape index: {}]
  %s3 = inlined_call_operand.vmem [shape: f32[1,32], index: 3, kind: input, shape index: {}]
  %s4 = inlined_call_operand.vmem [shape: bf16[32,64], index: 4, kind: input, shape index: {}]
  %s5 = inlined_call_operand.hbm [shape: f32[1,64], index: 5, kind: input, shape index: {}]
  %s6 = inlined_call_operand.vmem [shape: bf16[32,32], index: 6, kind: input, shape index: {}]
  %s7 = inlined_call_operand.hbm [shape: f32[1,32], index: 7, kind: input, shape index: {}]
  %s8 = inlined_call_operand.vmem [shape: f32[32,8], index: 8, kind: input, shape index: {}]
  %s9 = inlined_call_operand.vmem [shape: f32[8,32], index: 9, kind: input, shape index: {}]
  %s10 = inlined_call_operand.hbm [shape: f32[2,32], index: 10, kind: output, shape index: {}]
  %s11 = sld [smem:[#allocation0]]
  $region62: #{tpu_custom_call.1} parent=0
    _
  %s13 = ssub.s32 1, %s11
  %s14 = scalar_select 0, %s13, %s11
  $region1: #{tpu_custom_call.1} parent=0
    #allocation2 [shape = 'u8[4096]{0}', space=vmem, size = 0x1000, scoped, tag = 'input window, operand 0, single buffered']
    #allocation3 [shape = 's32[1]{0}', space=sflag, size = 0x4, scoped, tag = 'scoped memory for tpu_custom_call.1']
    #allocation4 [shape = 's32[1]{0}', space=sflag, size = 0x4, scoped, tag = 'scoped memory for tpu_custom_call.1']
    #allocation5 [shape = 'u8[512]{0}', space=vmem, size = 0x400, scoped, tag = 'input window, operand 5, single buffered']
    #allocation6 [shape = 's32[1]{0}', space=sflag, size = 0x4, scoped, tag = 'scoped memory for tpu_custom_call.1']
    #allocation7 [shape = 'u8[512]{0}', space=vmem, size = 0x400, scoped, tag = 'input window, operand 7, single buffered']
    #allocation8 [shape = 'u8[1024]{0}', space=vmem, size = 0x400, scoped, tag = 'output window, operand 0, single buffered']
    %15 = vsyncpa [#allocation3], 0
    %16 = vsyncpa [#allocation6], 0
    %17 = vsyncpa [#allocation4], 0
    // Predicated region
    $region2: #{tpu_custom_call.1} parent=1 // pred_check
      _
    $region3: #{tpu_custom_call.1} parent=1 // pred_check_branch
      %19 = sbr.rel (0) target = $region5
    $region4: #{tpu_custom_call.1} parent=1 // pred_region
      %s21 = ssub.s32 128, 128
      %22 = vsyncadd [#allocation3], %s21
      %s23 = sshll.u32 [#allocation2], 4
      %s24 = int_to_ptr.vmem [resolvable:$true] %s23
      %29 = dma.hbm_to_vmem [thread:$0]  %s0, 128, %s24, [#allocation3], 64, 64, 4
    $region5: #{tpu_custom_call.1} parent=1 // pred_fallthru
      _
    // Predicated region
    $region6: #{tpu_custom_call.1} parent=1 // pred_check
      _
    $region7: #{tpu_custom_call.1} parent=1 // pred_check_branch
      %31 = sbr.rel (0) target = $region9
    $region8: #{tpu_custom_call.1} parent=1 // pred_region
      _
    $region9: #{tpu_custom_call.1} parent=1 // pred_fallthru
      _
    // Predicated region
    $region10: #{tpu_custom_call.1} parent=1 // pred_check
      _
    $region11: #{tpu_custom_call.1} parent=1 // pred_check_branch
      %33 = sbr.rel (0) target = $region13
    $region12: #{tpu_custom_call.1} parent=1 // pred_region
      _
    $region13: #{tpu_custom_call.1} parent=1 // pred_fallthru
      _
    // Predicated region
    $region14: #{tpu_custom_call.1} parent=1 // pred_check
      _
    $region15: #{tpu_custom_call.1} parent=1 // pred_check_branch
      %35 = sbr.rel (0) target = $region17
    $region16: #{tpu_custom_call.1} parent=1 // pred_region
      _
    $region17: #{tpu_custom_call.1} parent=1 // pred_fallthru
      _
    // Predicated region
    $region18: #{tpu_custom_call.1} parent=1 // pred_check
      _
    $region19: #{tpu_custom_call.1} parent=1 // pred_check_branch
      %37 = sbr.rel (0) target = $region21
    $region20: #{tpu_custom_call.1} parent=1 // pred_region
      _
    $region21: #{tpu_custom_call.1} parent=1 // pred_fallthru
      _
    // Predicated region
    $region22: #{tpu_custom_call.1} parent=1 // pred_check
      _
    $region23: #{tpu_custom_call.1} parent=1 // pred_check_branch
      %39 = sbr.rel (0) target = $region25
    $region24: #{tpu_custom_call.1} parent=1 // pred_region
      %s41 = ssub.s32 16, 16
      %42 = vsyncadd [#allocation6], %s41
      %s44 = sshll.u32 [#allocation5], 4
      %s45 = int_to_ptr.vmem [resolvable:$true] %s44
      %47 = dma.hbm_to_vmem [thread:$0]  %s5, 16, %s45, [#allocation6]
    $region25: #{tpu_custom_call.1} parent=1 // pred_fallthru
      _
    // Predicated region
    $region26: #{tpu_custom_call.1} parent=1 // pred_check
      _
    $region27: #{tpu_custom_call.1} parent=1 // pred_check_branch
      %49 = sbr.rel (0) target = $region29
    $region28: #{tpu_custom_call.1} parent=1 // pred_region
      _
    $region29: #{tpu_custom_call.1} parent=1 // pred_fallthru
      _
    // Predicated region
    $region30: #{tpu_custom_call.1} parent=1 // pred_check
      _
    $region31: #{tpu_custom_call.1} parent=1 // pred_check_branch
      %51 = sbr.rel (0) target = $region33
    $region32: #{tpu_custom_call.1} parent=1 // pred_region
      %s53 = ssub.s32 16, 16
      %54 = vsyncadd [#allocation6], %s53
      %s56 = sshll.u32 [#allocation7], 4
      %s57 = int_to_ptr.vmem [resolvable:$true] %s56
      %59 = dma.hbm_to_vmem [thread:$0]  %s7, 16, %s57, [#allocation6]
    $region33: #{tpu_custom_call.1} parent=1 // pred_fallthru
      _
    // Predicated region
    $region34: #{tpu_custom_call.1} parent=1 // pred_check
      _
    $region35: #{tpu_custom_call.1} parent=1 // pred_check_branch
      %61 = sbr.rel (0) target = $region37
    $region36: #{tpu_custom_call.1} parent=1 // pred_region
      _
    $region37: #{tpu_custom_call.1} parent=1 // pred_fallthru
      _
    // Predicated region
    $region38: #{tpu_custom_call.1} parent=1 // pred_check
      _
    $region39: #{tpu_custom_call.1} parent=1 // pred_check_branch
      %63 = sbr.rel (0) target = $region41
    $region40: #{tpu_custom_call.1} parent=1 // pred_region
      _
    $region41: #{tpu_custom_call.1} parent=1 // pred_fallthru
      _
    // Predicated region
    $region42: #{tpu_custom_call.1} parent=1 // pred_check
      _
    $region43: #{tpu_custom_call.1} parent=1 // pred_check_branch
      %65 = sbr.rel (0) target = $region45
    $region44: #{tpu_custom_call.1} parent=1 // pred_region
      %66 = dma.done [#allocation3], 128
    $region45: #{tpu_custom_call.1} parent=1 // pred_fallthru
      _
    // Predicated region
    $region46: #{tpu_custom_call.1} parent=1 // pred_check
      _
    $region47: #{tpu_custom_call.1} parent=1 // pred_check_branch
      %68 = sbr.rel (0) target = $region49
    $region48: #{tpu_custom_call.1} parent=1 // pred_region
      %69 = dma.done [#allocation6], 16
    $region49: #{tpu_custom_call.1} parent=1 // pred_fallthru
      _
    // Predicated region
    $region50: #{tpu_custom_call.1} parent=1 // pred_check
      _
    $region51: #{tpu_custom_call.1} parent=1 // pred_check_branch
      %71 = sbr.rel (0) target = $region53
    $region52: #{tpu_custom_call.1} parent=1 // pred_region
      %72 = dma.done [#allocation6], 16
    $region53: #{tpu_custom_call.1} parent=1 // pred_fallthru
      _
    %v74 = vld [vmem:[#allocation2] sm:$0xf]
    %v75 = vld [vmem:[#allocation2 + $0x4] sm:$0xf]
    %v76 = vld [vmem:[%s4] sm:$0xf]
    %v77 = vld [vmem:[%s4 + $0x4] sm:$0xf]
    %v78 = vld [vmem:[%s4 + $0x8] sm:$0xf]
    %v79 = vld [vmem:[%s4 + $0xc] sm:$0xf]
    %v80 = vld [vmem:[#allocation5] sm:$0x1]
    %v82 = vlaneseq
    %v83 = vshrl.u32 %v82, 7
    %v84 = vsub.s32 0, %v83
    %v85 = vrot.slane %v80, %v84
    %v89 = vunpack.c.l.b16 %v74
    %v90 = vunpack.c.l.b16 %v75
    %v91 = vpack.c.b16 %v90, %v89
    %v96 = vunpack.c.l.b16 %v76
    %v97 = vunpack.c.l.b16 %v77
    %v98 = vunpack.c.l.b16 %v78
    %v99 = vunpack.c.l.b16 %v79
    %v100 = vpack.c.b16 %v97, %v96
    %v101 = vpack.c.b16 %v99, %v98
    %vm104 = vcmask 261120
    %v106 = vsel %vm104, %v91, 0
    %108 = vmatprep.subr.bf16.mxu0 0
    %109 = vmatpush1.bf16.msra.mxu0 %v100
    %110 = vmatprep.subr.bf16.mxu0 0
    %111 = vmatpush1.bf16.msra.mxu0 %v101
    %112 = vmatprep.subr.bf16.mxu0 0
    %113 = vmatpush1.bf16.msra.mxu0 0
    %114 = vmatprep.subr.bf16.mxu0 0
    %115 = vmatpush1.bf16.msra.mxu0 0
    %116 = vmatprep.subr.bf16.mxu0 0
    %117 = vmatpush1.bf16.msra.mxu0 0
    %118 = vmatprep.subr.bf16.mxu0 0
    %119 = vmatpush1.bf16.msra.mxu0 0
    %120 = vmatprep.subr.bf16.mxu0 0
    %121 = vmatpush1.bf16.msra.mxu0 0
    %122 = vmatprep.subr.bf16.mxu0 0
    %123 = vmatpush1.bf16.msra.mxu0 0
    %124 = vmatprep.subr.bf16.mxu0 0
    %125 = vmatpush1.bf16.msra.mxu0 0
    %126 = vmatprep.subr.bf16.mxu0 0
    %127 = vmatpush1.bf16.msra.mxu0 0
    %128 = vmatprep.subr.bf16.mxu0 0
    %129 = vmatpush1.bf16.msra.mxu0 0
    %130 = vmatprep.subr.bf16.mxu0 0
    %131 = vmatpush1.bf16.msra.mxu0 0
    %132 = vmatprep.subr.bf16.mxu0 0
    %133 = vmatpush1.bf16.msra.mxu0 0
    %134 = vmatprep.subr.bf16.mxu0 0
    %135 = vmatpush1.bf16.msra.mxu0 0
    %136 = vmatprep.subr.bf16.mxu0 0
    %137 = vmatpush1.bf16.msra.mxu0 0
    %138 = vmatprep.subr.bf16.mxu0 0
    %139 = vmatpush1.bf16.msra.mxu0 0
    %140 = vmatprep.mubr.bf16.mxu0 0
    %141 = vmatmul.mubr.bf16.gmra.mrb[0].mxu0 %v106
    %v142 = vpop.f32.mrb[0].mxu0
    %v143 = vadd.f32 %v85, %v142
    %v144 = vpop.f32.mrb[0].mxu0
    %v145 = vpop.f32.mrb[0].mxu0
    %v146 = vadd.f32 %v85, %v145
    %v147 = vpop.f32.mrb[0].mxu0
    %148 = vdwg.mxu0
    %v149 = vld [vmem:[%s1] sm:$0x1]
    %v150 = vld [vmem:[%s2] sm:$0xf]
    %v151 = vld [vmem:[%s2 + $0x4] sm:$0xf]
    %v152 = vld [vmem:[%s2 + $0x8] sm:$0xf]
    %v153 = vld [vmem:[%s2 + $0xc] sm:$0xf]
    %v154 = vld [vmem:[%s3] sm:$0x1]
    %v156 = vlaneseq
    %v157 = vshrl.u32 %v156, 7
    %v158 = vsub.s32 0, %v157
    %v159 = vrot.slane %v154, %v158
    %v165 = vunpack.c.l.b16 %v150
    %v166 = vunpack.c.l.b16 %v151
    %v167 = vunpack.c.l.b16 %v152
    %v168 = vunpack.c.l.b16 %v153
    %v169 = vpack.c.b16 %v166, %v165
    %v170 = vpack.c.b16 %v168, %v167
    %v174 = vsel %vm104, %v149, 0
    %176 = vmatprep.subr.bf16.mxu0 0
    %177 = vmatpush1.bf16.msra.mxu0 %v169
    %178 = vmatprep.subr.bf16.mxu0 0
    %179 = vmatpush1.bf16.msra.mxu0 %v170
    %180 = vmatprep.subr.bf16.mxu0 0
    %181 = vmatpush1.bf16.msra.mxu0 0
    %182 = vmatprep.subr.bf16.mxu0 0
    %183 = vmatpush1.bf16.msra.mxu0 0
    %184 = vmatprep.subr.bf16.mxu0 0
    %185 = vmatpush1.bf16.msra.mxu0 0
    %186 = vmatprep.subr.bf16.mxu0 0
    %187 = vmatpush1.bf16.msra.mxu0 0
    %188 = vmatprep.subr.bf16.mxu0 0
    %189 = vmatpush1.bf16.msra.mxu0 0
    %190 = vmatprep.subr.bf16.mxu0 0
    %191 = vmatpush1.bf16.msra.mxu0 0
    %192 = vmatprep.subr.bf16.mxu0 0
    %193 = vmatpush1.bf16.msra.mxu0 0
    %194 = vmatprep.subr.bf16.mxu0 0
    %195 = vmatpush1.bf16.msra.mxu0 0
    %196 = vmatprep.subr.bf16.mxu0 0
    %197 = vmatpush1.bf16.msra.mxu0 0
    %198 = vmatprep.subr.bf16.mxu0 0
    %199 = vmatpush1.bf16.msra.mxu0 0
    %200 = vmatprep.subr.bf16.mxu0 0
    %201 = vmatpush1.bf16.msra.mxu0 0
    %202 = vmatprep.subr.bf16.mxu0 0
    %203 = vmatpush1.bf16.msra.mxu0 0
    %204 = vmatprep.subr.bf16.mxu0 0
    %205 = vmatpush1.bf16.msra.mxu0 0
    %206 = vmatprep.subr.bf16.mxu0 0
    %207 = vmatpush1.bf16.msra.mxu0 0
    %208 = vmatprep.mubr.bf16.mxu0 0
    %209 = vmatmul.mubr.bf16.gmra.mrb[0].mxu0 %v174
    %v210 = vpop.f32.mrb[0].mxu0
    %v211 = vadd.f32 %v159, %v210
    %v212 = vpop.f32.mrb[0].mxu0
    %v213 = vpop.f32.mrb[0].mxu0
    %v214 = vpop.f32.mrb[0].mxu0
    %215 = vdwg.mxu0
    %v216 = vmul.f32 %v211, 2.0
    %v219 = vunpack.c.l.s4 1966171168
    %v220 = vunpack.c.0.s8 %v219
    %v221 = vlaneseq
    %v222 = vshrl.u32 %v221, 7
    %v223 = vsub.s32 %v220, %v222
    %v224 = vrot.slane %v216, %v223
    %v225 = vcombine.high %v224, %v224
    %v227 = vunpack.c.l.s4 1966171168
    %v228 = vunpack.c.0.s8 %v227
    %v229 = vlaneseq
    %v230 = vshrl.u32 %v229, 7
    %v231 = vsub.s32 %v228, %v230
    %v232 = vrot.slane %v224, %v231
    %v234 = vunpack.c.l.s4 1966171168
    %v235 = vunpack.c.0.s8 %v234
    %v236 = vlaneseq
    %v237 = vshrl.u32 %v236, 7
    %v238 = vsub.s32 %v235, %v237
    %v239 = vrot.slane %v225, %v238
    %v240 = vlaneseq
    %v241 = vshrl.u32 %v240, 7
    %v242 = vsub.s32 0, %v241
    %v243 = vrot.slane %v232, %v242
    %v244 = vlaneseq
    %v245 = vshrl.u32 %v244, 7
    %v246 = vsub.s32 0, %v245
    %v247 = vrot.slane %v239, %v246
    %v250 = vmul.f32 %v243, %v143
    %v251 = vmul.f32 %v247, %v146
    %v252 = vld [vmem:[%s8] sm:$0xff]
    %v253 = vld [vmem:[%s8 + $0x8] sm:$0xff]
    %v254 = vld [vmem:[%s8 + $0x10] sm:$0xff]
    %v255 = vld [vmem:[%s8 + $0x18] sm:$0xff]
    %v257 = vsel %vm104, %v250, 0
    %v260 = vsel %vm104, %v251, 0
    %262 = vmatprep.subr.mxu0 0.0
    %263 = vmatpush1.msra.mxu0 %v252
    %264 = vmatprep.subr.mxu0 0.0
    %265 = vmatpush1.msra.mxu0 %v253
    %266 = vmatprep.subr.mxu0 0.0
    %267 = vmatpush1.msra.mxu0 %v254
    %268 = vmatprep.subr.mxu0 0.0
    %269 = vmatpush1.msra.mxu0 %v255
    %270 = vmatprep.subr.mxu0 0.0
    %271 = vmatpush1.msra.mxu0 0.0
    %272 = vmatprep.subr.mxu0 0.0
    %273 = vmatpush1.msra.mxu0 0.0
    %274 = vmatprep.subr.mxu0 0.0
    %275 = vmatpush1.msra.mxu0 0.0
    %276 = vmatprep.subr.mxu0 0.0
    %277 = vmatpush1.msra.mxu0 0.0
    %278 = vmatprep.subr.mxu0 0.0
    %279 = vmatpush1.msra.mxu0 0.0
    %280 = vmatprep.subr.mxu0 0.0
    %281 = vmatpush1.msra.mxu0 0.0
    %282 = vmatprep.subr.mxu0 0.0
    %283 = vmatpush1.msra.mxu0 0.0
    %284 = vmatprep.subr.mxu0 0.0
    %285 = vmatpush1.msra.mxu0 0.0
    %286 = vmatprep.subr.mxu0 0.0
    %287 = vmatpush1.msra.mxu0 0.0
    %288 = vmatprep.subr.mxu0 0.0
    %289 = vmatpush1.msra.mxu0 0.0
    %290 = vmatprep.subr.mxu0 0.0
    %291 = vmatpush1.msra.mxu0 0.0
    %292 = vmatprep.subr.mxu0 0.0
    %293 = vmatpush1.msra.mxu0 0.0
    %294 = vmatprep.subr.mxu0 0.0
    %295 = vmatpush1.msra.mxu0 0.0
    %296 = vmatprep.subr.mxu0 0.0
    %297 = vmatpush1.msra.mxu0 0.0
    %298 = vmatprep.subr.mxu0 0.0
    %299 = vmatpush1.msra.mxu0 0.0
    %300 = vmatprep.subr.mxu0 0.0
    %301 = vmatpush1.msra.mxu0 0.0
    %302 = vmatprep.subr.mxu0 0.0
    %303 = vmatpush1.msra.mxu0 0.0
    %304 = vmatprep.subr.mxu0 0.0
    %305 = vmatpush1.msra.mxu0 0.0
    %306 = vmatprep.subr.mxu0 0.0
    %307 = vmatpush1.msra.mxu0 0.0
    %308 = vmatprep.subr.mxu0 0.0
    %309 = vmatpush1.msra.mxu0 0.0
    %310 = vmatprep.subr.mxu0 0.0
    %311 = vmatpush1.msra.mxu0 0.0
    %312 = vmatprep.subr.mxu0 0.0
    %313 = vmatpush1.msra.mxu0 0.0
    %314 = vmatprep.subr.mxu0 0.0
    %315 = vmatpush1.msra.mxu0 0.0
    %316 = vmatprep.subr.mxu0 0.0
    %317 = vmatpush1.msra.mxu0 0.0
    %318 = vmatprep.subr.mxu0 0.0
    %319 = vmatpush1.msra.mxu0 0.0
    %320 = vmatprep.subr.mxu0 0.0
    %321 = vmatpush1.msra.mxu0 0.0
    %322 = vmatprep.subr.mxu0 0.0
    %323 = vmatpush1.msra.mxu0 0.0
    %324 = vmatprep.subr.mxu0 0.0
    %325 = vmatpush1.msra.mxu0 0.0
    %326 = vmatprep.mubr.f32.mxu0 0.0
    %327 = vmatmul.mubr.f32.gmra.mrb[0].mxu0 %v257
    %v328 = vpop.f32.mrb[0].mxu0
    %v329 = vadd.f32 0.0, %v328
    %v330 = vpop.f32.mrb[0].mxu0
    %331 = vmatprep.mubr.f32.mxu0 0.0
    %332 = vmatmul.mubr.f32.gmra.mrb[0].mxu0 %v260
    %v333 = vpop.f32.mrb[0].mxu0
    %v334 = vadd.f32 0.0, %v333
    %v335 = vpop.f32.mrb[0].mxu0
    %336 = vdwg.mxu0
    %vm337 = vcmask 64512
    %v338 = vsel %vm337, %v329, -inf
    %v339 = vrot.slane %v338, 4
    %v340 = vmax.f32 %v338, %v339
    %v341 = vrot.slane %v340, 2
    %v342 = vmax.f32 %v340, %v341
    %v343 = vrot.slane %v342, 1
    %v344 = vmax.f32 %v342, %v343
    %v345 = vsel %vm337, %v334, -inf
    %v346 = vrot.slane %v345, 4
    %v347 = vmax.f32 %v345, %v346
    %v348 = vrot.slane %v347, 2
    %v349 = vmax.f32 %v347, %v348
    %v350 = vrot.slane %v349, 1
    %v351 = vmax.f32 %v349, %v350
    %v352 = vsub.f32 %v329, %v344
    %v353 = vsub.f32 %v334, %v351
    %v354 = vmul.f32 %v352, 1.442695
    %v355 = vpow.pop %v354
    %v356 = vmul.f32 %v353, 1.442695
    %v357 = vpow.pop %v356
    %v358 = vld [vmem:[%s9] sm:$0xff]
    %v360 = vsel %vm337, %v355, 0
    %v363 = vsel %vm337, %v357, 0
    %365 = vmatprep.subr.mxu0 0.0
    %366 = vmatpush1.msra.mxu0 %v358
    %367 = vmatprep.subr.mxu0 0.0
    %368 = vmatpush1.msra.mxu0 0.0
    %369 = vmatprep.subr.mxu0 0.0
    %370 = vmatpush1.msra.mxu0 0.0
    %371 = vmatprep.subr.mxu0 0.0
    %372 = vmatpush1.msra.mxu0 0.0
    %373 = vmatprep.subr.mxu0 0.0
    %374 = vmatpush1.msra.mxu0 0.0
    %375 = vmatprep.subr.mxu0 0.0
    %376 = vmatpush1.msra.mxu0 0.0
    %377 = vmatprep.subr.mxu0 0.0
    %378 = vmatpush1.msra.mxu0 0.0
    %379 = vmatprep.subr.mxu0 0.0
    %380 = vmatpush1.msra.mxu0 0.0
    %381 = vmatprep.subr.mxu0 0.0
    %382 = vmatpush1.msra.mxu0 0.0
    %383 = vmatprep.subr.mxu0 0.0
    %384 = vmatpush1.msra.mxu0 0.0
    %385 = vmatprep.subr.mxu0 0.0
    %386 = vmatpush1.msra.mxu0 0.0
    %387 = vmatprep.subr.mxu0 0.0
    %388 = vmatpush1.msra.mxu0 0.0
    %389 = vmatprep.subr.mxu0 0.0
    %390 = vmatpush1.msra.mxu0 0.0
    %391 = vmatprep.subr.mxu0 0.0
    %392 = vmatpush1.msra.mxu0 0.0
    %393 = vmatprep.subr.mxu0 0.0
    %394 = vmatpush1.msra.mxu0 0.0
    %395 = vmatprep.subr.mxu0 0.0
    %396 = vmatpush1.msra.mxu0 0.0
    %397 = vmatprep.subr.mxu0 0.0
    %398 = vmatpush1.msra.mxu0 0.0
    %399 = vmatprep.subr.mxu0 0.0
    %400 = vmatpush1.msra.mxu0 0.0
    %401 = vmatprep.subr.mxu0 0.0
    %402 = vmatpush1.msra.mxu0 0.0
    %403 = vmatprep.subr.mxu0 0.0
    %404 = vmatpush1.msra.mxu0 0.0
    %405 = vmatprep.subr.mxu0 0.0
    %406 = vmatpush1.msra.mxu0 0.0
    %407 = vmatprep.subr.mxu0 0.0
    %408 = vmatpush1.msra.mxu0 0.0
    %409 = vmatprep.subr.mxu0 0.0
    %410 = vmatpush1.msra.mxu0 0.0
    %411 = vmatprep.subr.mxu0 0.0
    %412 = vmatpush1.msra.mxu0 0.0
    %413 = vmatprep.subr.mxu0 0.0
    %414 = vmatpush1.msra.mxu0 0.0
    %415 = vmatprep.subr.mxu0 0.0
    %416 = vmatpush1.msra.mxu0 0.0
    %417 = vmatprep.subr.mxu0 0.0
    %418 = vmatpush1.msra.mxu0 0.0
    %419 = vmatprep.subr.mxu0 0.0
    %420 = vmatpush1.msra.mxu0 0.0
    %421 = vmatprep.subr.mxu0 0.0
    %422 = vmatpush1.msra.mxu0 0.0
    %423 = vmatprep.subr.mxu0 0.0
    %424 = vmatpush1.msra.mxu0 0.0
    %425 = vmatprep.subr.mxu0 0.0
    %426 = vmatpush1.msra.mxu0 0.0
    %427 = vmatprep.subr.mxu0 0.0
    %428 = vmatpush1.msra.mxu0 0.0
    %429 = vmatprep.mubr.f32.mxu0 0.0
    %430 = vmatmul.mubr.f32.gmra.mrb[0].mxu0 %v360
    %v431 = vpop.f32.mrb[0].mxu0
    %v432 = vadd.f32 0.0, %v431
    %v433 = vpop.f32.mrb[0].mxu0
    %434 = vmatprep.mubr.f32.mxu0 0.0
    %435 = vmatmul.mubr.f32.gmra.mrb[0].mxu0 %v363
    %v436 = vpop.f32.mrb[0].mxu0
    %v437 = vadd.f32 0.0, %v436
    %v438 = vpop.f32.mrb[0].mxu0
    %439 = vdwg.mxu0
    %442 = vrot.lane.b32.xlu0 %v143, 96
    %v443 = vpop.permute.xlu0 %442
    %444 = vrot.lane.b32.xlu0 %v146, 96
    %v445 = vpop.permute.xlu0 %444
    %v448 = vmul.f32 %v432, %v443
    %v449 = vmul.f32 %v437, %v445
    %v450 = vsel %vm104, %v448, 0.0
    %v451 = vrot.slane %v450, 4
    %v452 = vadd.f32 %v450, %v451
    %v453 = vrot.slane %v452, 2
    %v454 = vadd.f32 %v452, %v453
    %v455 = vrot.slane %v454, 1
    %v456 = vadd.f32 %v454, %v455
    %v457 = vsel %vm104, %v449, 0.0
    %v458 = vrot.slane %v457, 4
    %v459 = vadd.f32 %v457, %v458
    %v460 = vrot.slane %v459, 2
    %v461 = vadd.f32 %v459, %v460
    %v462 = vrot.slane %v461, 1
    %v463 = vadd.f32 %v461, %v462
    %v464 = vsel %vm104, %v432, 0.0
    %v465 = vrot.slane %v464, 4
    %v466 = vadd.f32 %v464, %v465
    %v467 = vrot.slane %v466, 2
    %v468 = vadd.f32 %v466, %v467
    %v469 = vrot.slane %v468, 1
    %v470 = vadd.f32 %v468, %v469
    %v471 = vsel %vm104, %v437, 0.0
    %v472 = vrot.slane %v471, 4
    %v473 = vadd.f32 %v471, %v472
    %v474 = vrot.slane %v473, 2
    %v475 = vadd.f32 %v473, %v474
    %v476 = vrot.slane %v475, 1
    %v477 = vadd.f32 %v475, %v476
    %v478 = vrcp.pop %v470
    %v479 = vrcp.pop %v477
    %v480 = vmul.f32 %v456, %v478
    %v481 = vmul.f32 %v463, %v479
    %v482 = vpack.c.bf16 %v480, %v480
    %v483 = vpack.c.bf16 %v481, %v481
    %v484 = vld [vmem:[%s6] sm:$0xf]
    %v485 = vld [vmem:[%s6 + $0x4] sm:$0xf]
    %v486 = vld [vmem:[%s6 + $0x8] sm:$0xf]
    %v487 = vld [vmem:[%s6 + $0xc] sm:$0xf]
    %v488 = vld [vmem:[#allocation7] sm:$0x1]
    %v490 = vlaneseq
    %v491 = vshrl.u32 %v490, 7
    %v492 = vsub.s32 0, %v491
    %v493 = vrot.slane %v488, %v492
    %v497 = vunpack.c.l.b16 %v482
    %v498 = vunpack.c.l.b16 %v483
    %vm499 = vcmask 1041409
    %v500 = vsel %vm499, %v498, %v497
    %v501 = vpack.c.b16 %v500, %v500
    %v506 = vunpack.c.l.b16 %v484
    %v507 = vunpack.c.l.b16 %v485
    %v508 = vunpack.c.l.b16 %v486
    %v509 = vunpack.c.l.b16 %v487
    %v510 = vpack.c.b16 %v507, %v506
    %v511 = vpack.c.b16 %v509, %v508
    %v515 = vsel %vm104, %v501, 0
    %517 = vmatprep.subr.bf16.mxu0 0
    %518 = vmatpush1.bf16.msra.mxu0 %v510
    %519 = vmatprep.subr.bf16.mxu0 0
    %520 = vmatpush1.bf16.msra.mxu0 %v511
    %521 = vmatprep.subr.bf16.mxu0 0
    %522 = vmatpush1.bf16.msra.mxu0 0
    %523 = vmatprep.subr.bf16.mxu0 0
    %524 = vmatpush1.bf16.msra.mxu0 0
    %525 = vmatprep.subr.bf16.mxu0 0
    %526 = vmatpush1.bf16.msra.mxu0 0
    %527 = vmatprep.subr.bf16.mxu0 0
    %528 = vmatpush1.bf16.msra.mxu0 0
    %529 = vmatprep.subr.bf16.mxu0 0
    %530 = vmatpush1.bf16.msra.mxu0 0
    %531 = vmatprep.subr.bf16.mxu0 0
    %532 = vmatpush1.bf16.msra.mxu0 0
    %533 = vmatprep.subr.bf16.mxu0 0
    %534 = vmatpush1.bf16.msra.mxu0 0
    %535 = vmatprep.subr.bf16.mxu0 0
    %536 = vmatpush1.bf16.msra.mxu0 0
    %537 = vmatprep.subr.bf16.mxu0 0
    %538 = vmatpush1.bf16.msra.mxu0 0
    %539 = vmatprep.subr.bf16.mxu0 0
    %540 = vmatpush1.bf16.msra.mxu0 0
    %541 = vmatprep.subr.bf16.mxu0 0
    %542 = vmatpush1.bf16.msra.mxu0 0
    %543 = vmatprep.subr.bf16.mxu0 0
    %544 = vmatpush1.bf16.msra.mxu0 0
    %545 = vmatprep.subr.bf16.mxu0 0
    %546 = vmatpush1.bf16.msra.mxu0 0
    %547 = vmatprep.subr.bf16.mxu0 0
    %548 = vmatpush1.bf16.msra.mxu0 0
    %549 = vmatprep.mubr.bf16.mxu0 0
    %550 = vmatmul.mubr.bf16.gmra.mrb[0].mxu0 %v515
    %v551 = vpop.f32.mrb[0].mxu0
    %v552 = vadd.f32 %v493, %v551
    %v553 = vpop.f32.mrb[0].mxu0
    %v554 = vpop.f32.mrb[0].mxu0
    %v555 = vpop.f32.mrb[0].mxu0
    %556 = vdwg.mxu0
    %vm557 = vcmask 254976
    %558 = vst.msk [vmem:[#allocation8] sm:$0x3] %vm557, %v552
    // Predicated region
    $region54: #{tpu_custom_call.1} parent=1 // pred_check
      _
    $region55: #{tpu_custom_call.1} parent=1 // pred_check_branch
      %560 = sbr.rel (0) target = $region57
    $region56: #{tpu_custom_call.1} parent=1 // pred_region
      %s562 = ssub.s32 32, 32
      %563 = vsyncadd [#allocation4], %s562
      %s565 = sshll.u32 [#allocation8], 4
      %s566 = int_to_ptr.vmem [resolvable:$true] %s565
      %568 = dma.vmem_to_hbm [thread:$0]  %s566, 32, %s10, [#allocation4]
    $region57: #{tpu_custom_call.1} parent=1 // pred_fallthru
      _
    // Predicated region
    $region58: #{tpu_custom_call.1} parent=1 // pred_check
      _
    $region59: #{tpu_custom_call.1} parent=1 // pred_check_branch
      %570 = sbr.rel (0) target = $region61
    $region60: #{tpu_custom_call.1} parent=1 // pred_region
      %571 = dma.done [#allocation4], 32
    $region61: #{tpu_custom_call.1} parent=1 // pred_fallthru
      _
    %572 = vsyncpa [#allocation3], 1
    %573 = vsyncpa [#allocation6], 1
    %574 = vsyncpa [#allocation4], 1

</llo_original>
